<compile_context>
chip_gen: v7x
topology: tpu7x:2x2x1
jax: 0.10.0
libtpu: 0.0.40
codegen_flags: <defaults>
</compile_context>

<pallas_src>
import functools
import math

import jax
import jax.numpy as jnp
from jax.experimental import pallas as pl
from jax.experimental.pallas import tpu as pltpu


# ---------------------------------------------------------------------------
# Kernels (weights arrive pre-transposed as (n_in, tn) tiles; no .T inside)
# ---------------------------------------------------------------------------
def _vblinear_train_kernel(x_ref, mu_wT_ref, s2_wT_ref, bias_ref, noise_ref, o_ref):
    x = x_ref[...]
    # mu_out = x @ mu_w.T + bias          (MXU, f32 accumulation)
    mu_out = jnp.dot(x, mu_wT_ref[...], preferred_element_type=jnp.float32)
    mu_out = mu_out + bias_ref[...]
    # var_out = (x**2) @ s2_w.T + 1e-8    (MXU, f32 accumulation)
    var_out = jnp.dot(x * x, s2_wT_ref[...], preferred_element_type=jnp.float32)
    var_out = var_out + 1e-8
    o_ref[...] = (mu_out + jnp.sqrt(var_out) * noise_ref[...]).astype(o_ref.dtype)


def _vblinear_linear_kernel(x_ref, wT_ref, bias_ref, o_ref, *, eps):
    out = jnp.dot(x_ref[...], wT_ref[...], preferred_element_type=jnp.float32)
    out = out + bias_ref[...]
    if eps:
        out = out + eps
    o_ref[...] = out.astype(o_ref.dtype)


# ---------------------------------------------------------------------------
# Tiling / padding helpers
# ---------------------------------------------------------------------------
def _round_up(v, m):
    return (v + m - 1) // m * m


def _pad2d(a, rows, cols):
    pr, pc = rows - a.shape[0], cols - a.shape[1]
    if pr or pc:
        a = jnp.pad(a, ((0, pr), (0, pc)))
    return a


def _prep_tiles(B, n_out, block_b, block_n):
    assert block_b % 8 == 0, "block_b must be a multiple of 8 (f32 sublane)"
    assert block_n % 128 == 0, "block_n must be a multiple of 128 (lane width)"
    tb = min(block_b, _round_up(B, 8))        # batch tile, multiple of 8
    B_p = _round_up(B, tb)                    # padded batch
    tn = min(block_n, _round_up(n_out, 128))  # n_out tile, multiple of 128
    n_out_p = _round_up(n_out, tn)            # padded n_out (lane-dense stores)
    return tb, B_p, tn, n_out_p


def _vmem_limit_bytes(tb, n_in, tn, n_weight_arrays, mm_itemsize):
    # Rough double-buffered tile footprint; clamp to a budget that is safe on
    # every generation (v7x physical VMEM is only 64 MiB per TensorCore).
    weights = n_weight_arrays * n_in * tn * mm_itemsize
    x_tile = tb * n_in * mm_itemsize
    io = (2 * tb * tn + tn) * 4               # noise/out/bias tiles (f32)
    est = 2 * (weights + x_tile + io)         # x2 for double buffering
    return int(min(max(2 * est, 32 * 1024 * 1024), 48 * 1024 * 1024))


def _compiler_params(tb, n_in, tn, n_weight_arrays, mm_itemsize):
    return pltpu.CompilerParams(
        dimension_semantics=("parallel", "parallel"),
        vmem_limit_bytes=_vmem_limit_bytes(tb, n_in, tn, n_weight_arrays, mm_itemsize),
    )


# NOTE: for layers where n_in itself no longer fits a single (tb, n_in) /
# (n_in, tn) tile in VMEM, a trailing "arbitrary" reduction axis over n_in
# with a (tb, tn) f32 accumulator (pl.when init/finalize) would be added;
# unnecessary at the sizes exercised here.


# ---------------------------------------------------------------------------
# Wrappers
# ---------------------------------------------------------------------------
def vblinear_train_forward(x, mu_w, logsig2_w, bias, noise, *,
                           block_b=128, block_n=256, matmul_dtype=None):
    """Training-mode forward (local reparameterization trick)."""
    B, n_in = x.shape
    n_out = mu_w.shape[0]
    out_dtype = x.dtype
    tb, B_p, tn, n_out_p = _prep_tiles(B, n_out, block_b, block_n)

    # Weight-side math hoisted out of the batch loop (computed exactly once).
    s2_w = jnp.exp(jnp.clip(logsig2_w, -11.0, 11.0))

    # MXU-canonical (n_in, n_out) layout + lane-dense padding of n_out.
    mu_wT = _pad2d(mu_w.T, n_in, n_out_p)
    s2_wT = _pad2d(s2_w.T, n_in, n_out_p)
    bias2 = _pad2d(bias.reshape(1, n_out), 1, n_out_p).astype(jnp.float32)
    x_p = _pad2d(x, B_p, n_in)
    noise_p = _pad2d(noise, B_p, n_out_p).astype(jnp.float32)

    mm_dtype = jnp.dtype(matmul_dtype) if matmul_dtype is not None else jnp.dtype(x.dtype)
    x_p = x_p.astype(mm_dtype)
    mu_wT = mu_wT.astype(mm_dtype)
    s2_wT = s2_wT.astype(mm_dtype)

    grid = (B_p // tb, n_out_p // tn)
    grid_spec = pltpu.PrefetchScalarGridSpec(
        num_scalar_prefetch=0,
        grid=grid,
        in_specs=[
            pl.BlockSpec((tb, n_in), lambda i, j: (i, 0)),   # x tile
            pl.BlockSpec((n_in, tn), lambda i, j: (0, j)),   # mu_w^T tile
            pl.BlockSpec((n_in, tn), lambda i, j: (0, j)),   # s2_w^T tile
            pl.BlockSpec((1, tn), lambda i, j: (0, j)),      # bias tile
            pl.BlockSpec((tb, tn), lambda i, j: (i, j)),     # noise tile
        ],
        out_specs=pl.BlockSpec((tb, tn), lambda i, j: (i, j)),
    )
    out = pl.pallas_call(
        _vblinear_train_kernel,
        out_shape=jax.ShapeDtypeStruct((B_p, n_out_p), out_dtype),
        grid_spec=grid_spec,
        compiler_params=_compiler_params(tb, n_in, tn, 2, mm_dtype.itemsize),
    )(x_p, mu_wT, s2_wT, bias2, noise_p)
    return out[:B, :n_out]


def vblinear_eval_forward(x, mu_w, logsig2_w, bias, random_state=None, *,
                          enable_map=False, block_b=128, block_n=256,
                          matmul_dtype=None):
    """Eval-mode forward: sampled posterior weights (or MAP if enable_map)."""
    B, n_in = x.shape
    n_out = mu_w.shape[0]
    out_dtype = x.dtype
    tb, B_p, tn, n_out_p = _prep_tiles(B, n_out, block_b, block_n)

    if enable_map:
        weight = mu_w
        eps = 0.0
    else:
        if random_state is None:
            raise ValueError("random_state is required when enable_map=False")
        # Posterior weight sample, hoisted out of the batch loop.
        sig_w = jnp.exp(0.5 * jnp.clip(logsig2_w, -11.0, 11.0))
        weight = mu_w + sig_w * random_state
        eps = 1e-8

    wT = _pad2d(weight.T, n_in, n_out_p)
    bias2 = _pad2d(bias.reshape(1, n_out), 1, n_out_p).astype(jnp.float32)
    x_p = _pad2d(x, B_p, n_in)

    mm_dtype = jnp.dtype(matmul_dtype) if matmul_dtype is not None else jnp.dtype(x.dtype)
    x_p = x_p.astype(mm_dtype)
    wT = wT.astype(mm_dtype)

    grid = (B_p // tb, n_out_p // tn)
    grid_spec = pltpu.PrefetchScalarGridSpec(
        num_scalar_prefetch=0,
        grid=grid,
        in_specs=[
            pl.BlockSpec((tb, n_in), lambda i, j: (i, 0)),   # x tile
            pl.BlockSpec((n_in, tn), lambda i, j: (0, j)),   # weight^T tile
            pl.BlockSpec((1, tn), lambda i, j: (0, j)),      # bias tile
        ],
        out_specs=pl.BlockSpec((tb, tn), lambda i, j: (i, j)),
    )
    out = pl.pallas_call(
        functools.partial(_vblinear_linear_kernel, eps=eps),
        out_shape=jax.ShapeDtypeStruct((B_p, n_out_p), out_dtype),
        grid_spec=grid_spec,
        compiler_params=_compiler_params(tb, n_in, tn, 1, mm_dtype.itemsize),
    )(x_p, wT, bias2)
    return out[:B, :n_out]


# ---------------------------------------------------------------------------
# Pure-JAX references (mirror the PyTorch forward exactly)
# ---------------------------------------------------------------------------
def ref_train(x, mu_w, logsig2_w, bias, noise):
    mu_out = x @ mu_w.T + bias
    s2_w = jnp.exp(jnp.clip(logsig2_w, -11.0, 11.0))
    var_out = (x * x) @ s2_w.T + 1e-8
    return mu_out + jnp.sqrt(var_out) * noise


def ref_eval(x, mu_w, logsig2_w, bias, random_state):
    logsig2 = jnp.clip(logsig2_w, -11.0, 11.0)
    weight = mu_w + jnp.sqrt(jnp.exp(logsig2)) * random_state
    return x @ weight.T + bias + 1e-8


def ref_map(x, mu_w, bias):
    return x @ mu_w.T + bias


# ---------------------------------------------------------------------------
# Main
# ---------------------------------------------------------------------------
if __name__ == "__main__":
    B, n_in, n_out = 16, 32, 64
    std_init = -9.0

    key = jax.random.PRNGKey(0)
    k_mu, k_ls, k_x, k_noise, k_rand = jax.random.split(key, 5)

    # Deterministic parameter init mirroring VBLinear.reset_parameters():
    stdv = 1.0 / math.sqrt(n_in)
    mu_w = jax.random.normal(k_mu, (n_out, n_in), jnp.float32) * stdv
    logsig2_w = std_init + 0.001 * jax.random.normal(k_ls, (n_out, n_in), jnp.float32)
    bias = jnp.zeros((n_out,), jnp.float32)

    # Inputs + sampled Gaussians (stand-ins for torch.randn_like).
    x = jax.random.normal(k_x, (B, n_in), jnp.float32)
    noise = jax.random.normal(k_noise, (B, n_out), jnp.float32)
    random_state = jax.random.normal(k_rand, (n_out, n_in), jnp.float32)

    # Training-mode forward (local reparameterization trick).
    out_train = jax.block_until_ready(
        vblinear_train_forward(x, mu_w, logsig2_w, bias, noise)
    )
    expected_train = ref_train(x, mu_w, logsig2_w, bias, noise)
    assert out_train.shape == (B, n_out)
    assert jnp.allclose(out_train, expected_train, rtol=1e-5, atol=1e-5)

    # Eval-mode (sampled-weight) forward.
    out_eval = jax.block_until_ready(
        vblinear_eval_forward(x, mu_w, logsig2_w, bias, random_state)
    )
    expected_eval = ref_eval(x, mu_w, logsig2_w, bias, random_state)
    assert out_eval.shape == (B, n_out)
    assert jnp.allclose(out_eval, expected_eval, rtol=1e-5, atol=1e-5)

    # Eval-mode MAP forward (deterministic weights, no +1e-8).
    out_map = jax.block_until_ready(
        vblinear_eval_forward(x, mu_w, logsig2_w, bias, enable_map=True)
    )
    expected_map = ref_map(x, mu_w, bias)
    assert out_map.shape == (B, n_out)
    assert jnp.allclose(out_map, expected_map, rtol=1e-5, atol=1e-5)

    # bf16 matmul-operand path (v6e/v7x MXU peak; f32 accumulation + epilogue).
    out_bf16 = jax.block_until_ready(
        vblinear_train_forward(x, mu_w, logsig2_w, bias, noise,
                               matmul_dtype=jnp.bfloat16)
    )
    assert out_bf16.shape == (B, n_out)
    assert jnp.allclose(out_bf16, expected_train, rtol=5e-2, atol=5e-2)

    print("KERNEL_OK")
</pallas_src>

<mosaic_0001>
module attributes {stable_mosaic.version = 11 : i64} {
  func.func @_vblinear_train_kernel(%arg0: i32, %arg1: i32, %arg2: memref<16x32xf32, #tpu.memory_space<vmem>>, %arg3: memref<32x128xf32, #tpu.memory_space<vmem>>, %arg4: memref<32x128xf32, #tpu.memory_space<vmem>>, %arg5: memref<1x128xf32, #tpu.memory_space<vmem>>, %arg6: memref<16x128xf32, #tpu.memory_space<vmem>>, %arg7: memref<16x128xf32, #tpu.memory_space<vmem>>) attributes {dimension_semantics = [#tpu.dimension_semantics<parallel>, #tpu.dimension_semantics<parallel>], iteration_bounds = array<i64: 1, 1>, scalar_prefetch = 0 : i64, scratch_operands = 0 : i64, tpu.core_type = #tpu.core_type<tc>, window_params = [{transform_indices = @transform_0, window_bounds = array<i64: 16, 32>}, {transform_indices = @transform_1, window_bounds = array<i64: 32, 128>}, {transform_indices = @transform_2, window_bounds = array<i64: 32, 128>}, {transform_indices = @transform_3, window_bounds = array<i64: 1, 128>}, {transform_indices = @transform_4, window_bounds = array<i64: 16, 128>}, {transform_indices = @transform_5, window_bounds = array<i64: 16, 128>}]} {
    %c0 = arith.constant 0 : index
    %c0_0 = arith.constant 0 : index
    %0 = vector.load %arg2[%c0, %c0_0] : memref<16x32xf32, #tpu.memory_space<vmem>>, vector<16x32xf32>
    %c0_1 = arith.constant 0 : index
    %c0_2 = arith.constant 0 : index
    %1 = vector.load %arg3[%c0_1, %c0_2] : memref<32x128xf32, #tpu.memory_space<vmem>>, vector<32x128xf32>
    %cst = arith.constant dense<0.000000e+00> : vector<16x128xf32>
    %2 = tpu.matmul %0, %1, %cst {dimension_numbers = #tpu.dot_dimension_numbers<[1], [0], [0], [1], [0, 0, 1, 1], [], []>} : vector<16x32xf32>, vector<32x128xf32>, vector<16x128xf32> -> vector<16x128xf32>
    %c0_3 = arith.constant 0 : index
    %c0_4 = arith.constant 0 : index
    %3 = vector.load %arg5[%c0_3, %c0_4] : memref<1x128xf32, #tpu.memory_space<vmem>>, vector<1x128xf32>
    %4 = vector.broadcast %3 : vector<1x128xf32> to vector<16x128xf32>
    %5 = arith.addf %2, %4 : vector<16x128xf32>
    %6 = arith.mulf %0, %0 : vector<16x32xf32>
    %c0_5 = arith.constant 0 : index
    %c0_6 = arith.constant 0 : index
    %7 = vector.load %arg4[%c0_5, %c0_6] : memref<32x128xf32, #tpu.memory_space<vmem>>, vector<32x128xf32>
    %cst_7 = arith.constant dense<0.000000e+00> : vector<16x128xf32>
    %8 = tpu.matmul %6, %7, %cst_7 {dimension_numbers = #tpu.dot_dimension_numbers<[1], [0], [0], [1], [0, 0, 1, 1], [], []>} : vector<16x32xf32>, vector<32x128xf32>, vector<16x128xf32> -> vector<16x128xf32>
    %cst_8 = arith.constant 9.99999993E-9 : f32
    %9 = vector.broadcast %cst_8 : f32 to vector<16x128xf32>
    %10 = arith.addf %8, %9 : vector<16x128xf32>
    %11 = math.sqrt %10 : vector<16x128xf32>
    %c0_9 = arith.constant 0 : index
    %c0_10 = arith.constant 0 : index
    %12 = vector.load %arg6[%c0_9, %c0_10] : memref<16x128xf32, #tpu.memory_space<vmem>>, vector<16x128xf32>
    %13 = arith.mulf %11, %12 : vector<16x128xf32>
    %14 = arith.addf %5, %13 : vector<16x128xf32>
    %c0_11 = arith.constant 0 : index
    %c0_12 = arith.constant 0 : index
    %15 = vector.load %arg7[%c0_11, %c0_12] : memref<16x128xf32, #tpu.memory_space<vmem>>, vector<16x128xf32>
    tpu.vector_store %arg7[%c0_11, %c0_12], %14 {strides = array<i32>} : memref<16x128xf32, #tpu.memory_space<vmem>>, vector<16x128xf32>,
    return
  }
  func.func @transform_0(%arg0: i32, %arg1: i32) -> (i32, i32) {
    %c0_i32 = arith.constant 0 : i32
    %c0_i32_0 = arith.constant 0 : i32
    return %arg0, %c0_i32 : i32, i32
  }
  func.func @transform_1(%arg0: i32, %arg1: i32) -> (i32, i32) {
    %c0_i32 = arith.constant 0 : i32
    %c0_i32_0 = arith.constant 0 : i32
    return %c0_i32, %arg1 : i32, i32
  }
  func.func @transform_2(%arg0: i32, %arg1: i32) -> (i32, i32) {
    %c0_i32 = arith.constant 0 : i32
    %c0_i32_0 = arith.constant 0 : i32
    return %c0_i32, %arg1 : i32, i32
  }
  func.func @transform_3(%arg0: i32, %arg1: i32) -> (i32, i32) {
    %c0_i32 = arith.constant 0 : i32
    %c0_i32_0 = arith.constant 0 : i32
    return %c0_i32, %arg1 : i32, i32
  }
  func.func @transform_4(%arg0: i32, %arg1: i32) -> (i32, i32) {
    %c0_i32 = arith.constant 0 : i32
    return %arg0, %arg1 : i32, i32
  }
  func.func @transform_5(%arg0: i32, %arg1: i32) -> (i32, i32) {
    %c0_i32 = arith.constant 0 : i32
    return %arg0, %arg1 : i32, i32
  }
}

</mosaic_0001>

<llo_original>
// kernel: tpu_custom_call.1
$region0: #{tpu_custom_call.1}
  #allocation0 [shape = 'u32[]', space=smem, size = 0x4, offset = 0x4, fixed_abs, tag = 'smem constant byte address 0x4 - core index']
  #allocation1 [shape = 'u32[144,128]{1,0:T(1,128)}', space=vmem, size = 0x12000, scoped, tag = 'internal scratch']
  %s0 = inlined_call_operand.hbm [shape: f32[16,32], index: 0, kind: input, shape index: {}]
  %s1 = inlined_call_operand.hbm [shape: f32[32,128], index: 1, kind: input, shape index: {}]
  %s2 = inlined_call_operand.hbm [shape: f32[32,128], index: 2, kind: input, shape index: {}]
  %s3 = inlined_call_operand.vmem [shape: f32[1,128], index: 3, kind: input, shape index: {}]
  %s4 = inlined_call_operand.hbm [shape: f32[16,128], index: 4, kind: input, shape index: {}]
  %s5 = inlined_call_operand.hbm [shape: f32[16,128], index: 5, kind: output, shape index: {}]
  %s6 = sld [smem:[#allocation0]]
  $region46: #{tpu_custom_call.1} parent=0
    _
  %s8 = ssub.s32 1, %s6
  %s9 = scalar_select 0, %s8, %s6
  $region1: #{tpu_custom_call.1} parent=0
    #allocation2 [shape = 'u8[8192]{0}', space=vmem, size = 0x2000, scoped, tag = 'input window, operand 0, single buffered']
    #allocation3 [shape = 's32[1]{0}', space=sflag, size = 0x4, scoped, tag = 'scoped memory for tpu_custom_call.1']
    #allocation4 [shape = 's32[1]{0}', space=sflag, size = 0x4, scoped, tag = 'scoped memory for tpu_custom_call.1']
    #allocation5 [shape = 'u8[16384]{0}', space=vmem, size = 0x4000, scoped, tag = 'input window, operand 1, single buffered']
    #allocation6 [shape = 's32[1]{0}', space=sflag, size = 0x4, scoped, tag = 'scoped memory for tpu_custom_call.1']
    #allocation7 [shape = 'u8[16384]{0}', space=vmem, size = 0x4000, scoped, tag = 'input window, operand 2, single buffered']
    #allocation8 [shape = 'u8[8192]{0}', space=vmem, size = 0x2000, scoped, tag = 'input window, operand 4, single buffered']
    #allocation9 [shape = 's32[1]{0}', space=sflag, size = 0x4, scoped, tag = 'scoped memory for tpu_custom_call.1']
    #allocation10 [shape = 'u8[8192]{0}', space=vmem, size = 0x2000, scoped, tag = 'output window, operand 0, single buffered']
    %10 = vsyncpa [#allocation3], 0
    %11 = vsyncpa [#allocation6], 0
    %12 = vsyncpa [#allocation9], 0
    %13 = vsyncpa [#allocation4], 0
    // Predicated region
    $region2: #{tpu_custom_call.1} parent=1 // pred_check
      _
    $region3: #{tpu_custom_call.1} parent=1 // pred_check_branch
      %15 = sbr.rel (0) target = $region5
    $region4: #{tpu_custom_call.1} parent=1 // pred_region
      %s17 = ssub.s32 256, 256
      %18 = vsyncadd [#allocation3], %s17
      %s19 = sshll.u32 [#allocation2], 4
      %s20 = int_to_ptr.vmem [resolvable:$true] %s19
      %25 = dma.hbm_to_vmem [thread:$0]  %s0, 256, %s20, [#allocation3], 128, 128, 8
    $region5: #{tpu_custom_call.1} parent=1 // pred_fallthru
      _
    // Predicated region
    $region6: #{tpu_custom_call.1} parent=1 // pred_check
      _
    $region7: #{tpu_custom_call.1} parent=1 // pred_check_branch
      %27 = sbr.rel (0) target = $region9
    $region8: #{tpu_custom_call.1} parent=1 // pred_region
      %s29 = ssub.s32 512, 512
      %30 = vsyncadd [#allocation6], %s29
      %s31 = sshll.u32 [#allocation5], 4
      %s32 = int_to_ptr.vmem [resolvable:$true] %s31
      %37 = dma.hbm_to_vmem [thread:$0]  %s1, 512, %s32, [#allocation6], 128, 128, 8
    $region9: #{tpu_custom_call.1} parent=1 // pred_fallthru
      _
    // Predicated region
    $region10: #{tpu_custom_call.1} parent=1 // pred_check
      _
    $region11: #{tpu_custom_call.1} parent=1 // pred_check_branch
      %39 = sbr.rel (0) target = $region13
    $region12: #{tpu_custom_call.1} parent=1 // pred_region
      %s41 = ssub.s32 512, 512
      %42 = vsyncadd [#allocation6], %s41
      %s43 = sshll.u32 [#allocation7], 4
      %s44 = int_to_ptr.vmem [resolvable:$true] %s43
      %49 = dma.hbm_to_vmem [thread:$0]  %s2, 512, %s44, [#allocation6], 128, 128, 8
    $region13: #{tpu_custom_call.1} parent=1 // pred_fallthru
      _
    // Predicated region
    $region14: #{tpu_custom_call.1} parent=1 // pred_check
      _
    $region15: #{tpu_custom_call.1} parent=1 // pred_check_branch
      %51 = sbr.rel (0) target = $region17
    $region16: #{tpu_custom_call.1} parent=1 // pred_region
      _
    $region17: #{tpu_custom_call.1} parent=1 // pred_fallthru
      _
    // Predicated region
    $region18: #{tpu_custom_call.1} parent=1 // pred_check
      _
    $region19: #{tpu_custom_call.1} parent=1 // pred_check_branch
      %53 = sbr.rel (0) target = $region21
    $region20: #{tpu_custom_call.1} parent=1 // pred_region
      %s55 = ssub.s32 256, 256
      %56 = vsyncadd [#allocation9], %s55
      %s57 = sshll.u32 [#allocation8], 4
      %s58 = int_to_ptr.vmem [resolvable:$true] %s57
      %63 = dma.hbm_to_vmem [thread:$0]  %s4, 256, %s58, [#allocation9], 128, 128, 8
    $region21: #{tpu_custom_call.1} parent=1 // pred_fallthru
      _
    // Predicated region
    $region22: #{tpu_custom_call.1} parent=1 // pred_check
      _
    $region23: #{tpu_custom_call.1} parent=1 // pred_check_branch
      %65 = sbr.rel (0) target = $region25
    $region24: #{tpu_custom_call.1} parent=1 // pred_region
      %66 = dma.done [#allocation3], 256
    $region25: #{tpu_custom_call.1} parent=1 // pred_fallthru
      _
    // Predicated region
    $region26: #{tpu_custom_call.1} parent=1 // pred_check
      _
    $region27: #{tpu_custom_call.1} parent=1 // pred_check_branch
      %68 = sbr.rel (0) target = $region29
    $region28: #{tpu_custom_call.1} parent=1 // pred_region
      %69 = dma.done [#allocation6], 512
    $region29: #{tpu_custom_call.1} parent=1 // pred_fallthru
      _
    // Predicated region
    $region30: #{tpu_custom_call.1} parent=1 // pred_check
      _
    $region31: #{tpu_custom_call.1} parent=1 // pred_check_branch
      %71 = sbr.rel (0) target = $region33
    $region32: #{tpu_custom_call.1} parent=1 // pred_region
      %72 = dma.done [#allocation6], 512
    $region33: #{tpu_custom_call.1} parent=1 // pred_fallthru
      _
    // Predicated region
    $region34: #{tpu_custom_call.1} parent=1 // pred_check
      _
    $region35: #{tpu_custom_call.1} parent=1 // pred_check_branch
      %74 = sbr.rel (0) target = $region37
    $region36: #{tpu_custom_call.1} parent=1 // pred_region
      %75 = dma.done [#allocation9], 256
    $region37: #{tpu_custom_call.1} parent=1 // pred_fallthru
      _
    %v76 = vld [vmem:[#allocation2] sm:$0xff]
    %v77 = vld [vmem:[#allocation2 + $0x8] sm:$0xff]
    %v78 = vld [vmem:[#allocation5] sm:$0xff]
    %v79 = vld [vmem:[#allocation5 + $0x8] sm:$0xff]
    %v80 = vld [vmem:[#allocation5 + $0x10] sm:$0xff]
    %v81 = vld [vmem:[#allocation5 + $0x18] sm:$0xff]
    %v82 = vld [vmem:[%s3] sm:$0x1]
    %v84 = vlaneseq
    %v85 = vshrl.u32 %v84, 7
    %v86 = vsub.s32 0, %v85
    %v87 = vrot.slane %v82, %v86
    %vm89 = vcmask 261120
    %v91 = vsel %vm89, %v76, 0
    %v94 = vsel %vm89, %v77, 0
    %96 = vmatprep.subr.mxu0 0.0
    %97 = vmatpush1.msra.mxu0 %v78
    %98 = vmatprep.subr.mxu0 0.0
    %99 = vmatpush1.msra.mxu0 %v79
    %100 = vmatprep.subr.mxu0 0.0
    %101 = vmatpush1.msra.mxu0 %v80
    %102 = vmatprep.subr.mxu0 0.0
    %103 = vmatpush1.msra.mxu0 %v81
    %104 = vmatprep.subr.mxu0 0.0
    %105 = vmatpush1.msra.mxu0 0.0
    %106 = vmatprep.subr.mxu0 0.0
    %107 = vmatpush1.msra.mxu0 0.0
    %108 = vmatprep.subr.mxu0 0.0
    %109 = vmatpush1.msra.mxu0 0.0
    %110 = vmatprep.subr.mxu0 0.0
    %111 = vmatpush1.msra.mxu0 0.0
    %112 = vmatprep.subr.mxu0 0.0
    %113 = vmatpush1.msra.mxu0 0.0
    %114 = vmatprep.subr.mxu0 0.0
    %115 = vmatpush1.msra.mxu0 0.0
    %116 = vmatprep.subr.mxu0 0.0
    %117 = vmatpush1.msra.mxu0 0.0
    %118 = vmatprep.subr.mxu0 0.0
    %119 = vmatpush1.msra.mxu0 0.0
    %120 = vmatprep.subr.mxu0 0.0
    %121 = vmatpush1.msra.mxu0 0.0
    %122 = vmatprep.subr.mxu0 0.0
    %123 = vmatpush1.msra.mxu0 0.0
    %124 = vmatprep.subr.mxu0 0.0
    %125 = vmatpush1.msra.mxu0 0.0
    %126 = vmatprep.subr.mxu0 0.0
    %127 = vmatpush1.msra.mxu0 0.0
    %128 = vmatprep.subr.mxu0 0.0
    %129 = vmatpush1.msra.mxu0 0.0
    %130 = vmatprep.subr.mxu0 0.0
    %131 = vmatpush1.msra.mxu0 0.0
    %132 = vmatprep.subr.mxu0 0.0
    %133 = vmatpush1.msra.mxu0 0.0
    %134 = vmatprep.subr.mxu0 0.0
    %135 = vmatpush1.msra.mxu0 0.0
    %136 = vmatprep.subr.mxu0 0.0
    %137 = vmatpush1.msra.mxu0 0.0
    %138 = vmatprep.subr.mxu0 0.0
    %139 = vmatpush1.msra.mxu0 0.0
    %140 = vmatprep.subr.mxu0 0.0
    %141 = vmatpush1.msra.mxu0 0.0
    %142 = vmatprep.subr.mxu0 0.0
    %143 = vmatpush1.msra.mxu0 0.0
    %144 = vmatprep.subr.mxu0 0.0
    %145 = vmatpush1.msra.mxu0 0.0
    %146 = vmatprep.subr.mxu0 0.0
    %147 = vmatpush1.msra.mxu0 0.0
    %148 = vmatprep.subr.mxu0 0.0
    %149 = vmatpush1.msra.mxu0 0.0
    %150 = vmatprep.subr.mxu0 0.0
    %151 = vmatpush1.msra.mxu0 0.0
    %152 = vmatprep.subr.mxu0 0.0
    %153 = vmatpush1.msra.mxu0 0.0
    %154 = vmatprep.subr.mxu0 0.0
    %155 = vmatpush1.msra.mxu0 0.0
    %156 = vmatprep.subr.mxu0 0.0
    %157 = vmatpush1.msra.mxu0 0.0
    %158 = vmatprep.subr.mxu0 0.0
    %159 = vmatpush1.msra.mxu0 0.0
    %160 = vmatprep.mubr.f32.mxu0 0.0
    %161 = vmatmul.mubr.f32.gmra.mrb[0].mxu0 %v91
    %v162 = vpop.f32.mrb[0].mxu0
    %v163 = vadd.f32 %v87, %v162
    %v164 = vpop.f32.mrb[0].mxu0
    %165 = vmatprep.mubr.f32.mxu0 0.0
    %166 = vmatmul.mubr.f32.gmra.mrb[0].mxu0 %v94
    %v167 = vpop.f32.mrb[0].mxu0
    %v168 = vadd.f32 %v87, %v167
    %v169 = vpop.f32.mrb[0].mxu0
    %170 = vdwg.mxu0
    %v171 = vmul.f32 %v76, %v76
    %v172 = vmul.f32 %v77, %v77
    %v173 = vld [vmem:[#allocation7] sm:$0xff]
    %v174 = vld [vmem:[#allocation7 + $0x8] sm:$0xff]
    %v175 = vld [vmem:[#allocation7 + $0x10] sm:$0xff]
    %v176 = vld [vmem:[#allocation7 + $0x18] sm:$0xff]
    %v178 = vsel %vm89, %v171, 0
    %v181 = vsel %vm89, %v172, 0
    %183 = vmatprep.subr.mxu0 0.0
    %184 = vmatpush1.msra.mxu0 %v173
    %185 = vmatprep.subr.mxu0 0.0
    %186 = vmatpush1.msra.mxu0 %v174
    %187 = vmatprep.subr.mxu0 0.0
    %188 = vmatpush1.msra.mxu0 %v175
    %189 = vmatprep.subr.mxu0 0.0
    %190 = vmatpush1.msra.mxu0 %v176
    %191 = vmatprep.subr.mxu0 0.0
    %192 = vmatpush1.msra.mxu0 0.0
    %193 = vmatprep.subr.mxu0 0.0
    %194 = vmatpush1.msra.mxu0 0.0
    %195 = vmatprep.subr.mxu0 0.0
    %196 = vmatpush1.msra.mxu0 0.0
    %197 = vmatprep.subr.mxu0 0.0
    %198 = vmatpush1.msra.mxu0 0.0
    %199 = vmatprep.subr.mxu0 0.0
    %200 = vmatpush1.msra.mxu0 0.0
    %201 = vmatprep.subr.mxu0 0.0
    %202 = vmatpush1.msra.mxu0 0.0
    %203 = vmatprep.subr.mxu0 0.0
    %204 = vmatpush1.msra.mxu0 0.0
    %205 = vmatprep.subr.mxu0 0.0
    %206 = vmatpush1.msra.mxu0 0.0
    %207 = vmatprep.subr.mxu0 0.0
    %208 = vmatpush1.msra.mxu0 0.0
    %209 = vmatprep.subr.mxu0 0.0
    %210 = vmatpush1.msra.mxu0 0.0
    %211 = vmatprep.subr.mxu0 0.0
    %212 = vmatpush1.msra.mxu0 0.0
    %213 = vmatprep.subr.mxu0 0.0
    %214 = vmatpush1.msra.mxu0 0.0
    %215 = vmatprep.subr.mxu0 0.0
    %216 = vmatpush1.msra.mxu0 0.0
    %217 = vmatprep.subr.mxu0 0.0
    %218 = vmatpush1.msra.mxu0 0.0
    %219 = vmatprep.subr.mxu0 0.0
    %220 = vmatpush1.msra.mxu0 0.0
    %221 = vmatprep.subr.mxu0 0.0
    %222 = vmatpush1.msra.mxu0 0.0
    %223 = vmatprep.subr.mxu0 0.0
    %224 = vmatpush1.msra.mxu0 0.0
    %225 = vmatprep.subr.mxu0 0.0
    %226 = vmatpush1.msra.mxu0 0.0
    %227 = vmatprep.subr.mxu0 0.0
    %228 = vmatpush1.msra.mxu0 0.0
    %229 = vmatprep.subr.mxu0 0.0
    %230 = vmatpush1.msra.mxu0 0.0
    %231 = vmatprep.subr.mxu0 0.0
    %232 = vmatpush1.msra.mxu0 0.0
    %233 = vmatprep.subr.mxu0 0.0
    %234 = vmatpush1.msra.mxu0 0.0
    %235 = vmatprep.subr.mxu0 0.0
    %236 = vmatpush1.msra.mxu0 0.0
    %237 = vmatprep.subr.mxu0 0.0
    %238 = vmatpush1.msra.mxu0 0.0
    %239 = vmatprep.subr.mxu0 0.0
    %240 = vmatpush1.msra.mxu0 0.0
    %241 = vmatprep.subr.mxu0 0.0
    %242 = vmatpush1.msra.mxu0 0.0
    %243 = vmatprep.subr.mxu0 0.0
    %244 = vmatpush1.msra.mxu0 0.0
    %245 = vmatprep.subr.mxu0 0.0
    %246 = vmatpush1.msra.mxu0 0.0
    %247 = vmatprep.mubr.f32.mxu0 0.0
    %248 = vmatmul.mubr.f32.gmra.mrb[0].mxu0 %v178
    %v249 = vpop.f32.mrb[0].mxu0
    %v250 = vadd.f32 1e-08, %v249
    %v251 = vpop.f32.mrb[0].mxu0
    %252 = vmatprep.mubr.f32.mxu0 0.0
    %253 = vmatmul.mubr.f32.gmra.mrb[0].mxu0 %v181
    %v254 = vpop.f32.mrb[0].mxu0
    %v255 = vadd.f32 1e-08, %v254
    %v256 = vpop.f32.mrb[0].mxu0
    %257 = vdwg.mxu0
    %v258 = vrsqrt.pop %v250
    %v259 = vmul.f32 %v250, %v258
    %vm260 = vcmp.eq.f32.partialorder %v250, inf
    %v261 = vsel %vm260, %v250, %v259
    %vm262 = vcmp.eq.f32.partialorder %v250, 0.0
    %v263 = vand.u32 %v250, 2147483648
    %v264 = vsel %vm262, %v263, %v261
    %v265 = vrsqrt.pop %v255
    %v266 = vmul.f32 %v255, %v265
    %vm267 = vcmp.eq.f32.partialorder %v255, inf
    %v268 = vsel %vm267, %v255, %v266
    %vm269 = vcmp.eq.f32.partialorder %v255, 0.0
    %v270 = vand.u32 %v255, 2147483648
    %v271 = vsel %vm269, %v270, %v268
    %v272 = vld [vmem:[#allocation8] sm:$0xff]
    %v273 = vld [vmem:[#allocation8 + $0x8] sm:$0xff]
    %v274 = vmul.f32 %v264, %v272
    %v275 = vmul.f32 %v271, %v273
    %v276 = vadd.f32 %v163, %v274
    %v277 = vadd.f32 %v168, %v275
    %278 = vst [vmem:[#allocation10] sm:$0xff] %v276
    %279 = vst [vmem:[#allocation10 + $0x8] sm:$0xff] %v277
    // Predicated region
    $region38: #{tpu_custom_call.1} parent=1 // pred_check
      _
    $region39: #{tpu_custom_call.1} parent=1 // pred_check_branch
      %281 = sbr.rel (0) target = $region41
    $region40: #{tpu_custom_call.1} parent=1 // pred_region
      %s283 = ssub.s32 256, 256
      %284 = vsyncadd [#allocation4], %s283
      %s285 = sshll.u32 [#allocation10], 4
      %s286 = int_to_ptr.vmem [resolvable:$true] %s285
      %291 = dma.vmem_to_hbm [thread:$0]  %s286, 256, %s5, [#allocation4], 128, 128, 8
    $region41: #{tpu_custom_call.1} parent=1 // pred_fallthru
      _
    // Predicated region
    $region42: #{tpu_custom_call.1} parent=1 // pred_check
      _
    $region43: #{tpu_custom_call.1} parent=1 // pred_check_branch
      %293 = sbr.rel (0) target = $region45
    $region44: #{tpu_custom_call.1} parent=1 // pred_region
      %294 = dma.done [#allocation4], 256
    $region45: #{tpu_custom_call.1} parent=1 // pred_fallthru
      _
    %295 = vsyncpa [#allocation3], 1
    %296 = vsyncpa [#allocation6], 1
    %297 = vsyncpa [#allocation9], 1
    %298 = vsyncpa [#allocation4], 1

</llo_original>
